<compile_context>
chip_gen: v7x
topology: tpu7x:2x2x1
jax: 0.10.0
libtpu: 0.0.40
codegen_flags: <defaults>
</compile_context>

<pallas_src>
import functools

import jax
import jax.numpy as jnp
from jax.experimental import pallas as pl
from jax.experimental.pallas import tpu as pltpu


def _round_up(v, m):
    return ((v + m - 1) // m) * m


# --------------------------------------------------------------------------
# Kernels
# --------------------------------------------------------------------------

def _agg_plain_kernel(x_ref, mask_ref, out_ref, *, group):
    # x_ref: (TB*G, D) f32, mask_ref: (TB*G, 1) f32, out_ref: (TB, D) f32
    xm = x_ref[...] + mask_ref[...]                  # lane-broadcast mask add
    rows, d = xm.shape
    out_ref[...] = jnp.max(xm.reshape(rows // group, group, d), axis=1)


def _agg_mlp_kernel(x_ref, mask_ref, w_ref, b_ref, out_ref, *, group):
    # x_ref: (TB*G, D) f32/bf16, mask_ref: (TB*G, 1) f32,
    # w_ref: (D, TN) f32/bf16,   b_ref: (1, TN) f32,   out_ref: (TB, TN) f32
    # One MXU matmul per grid step, f32 accumulation (bf16 cast done in the
    # wrapper so the DMA already moved half the bytes).
    z = jnp.dot(x_ref[...], w_ref[...], preferred_element_type=jnp.float32)
    zm = z + mask_ref[...]                           # 0 / -inf mask
    rows, tn = zm.shape
    zmax = jnp.max(zm.reshape(rows // group, group, tn), axis=1)   # (TB, TN)
    # bias + ReLU + tanh hoisted past the masked max (per-column constant and
    # monotone nondecreasing), cutting VPU/EUP work by a factor of G.
    act = jnp.tanh(jnp.maximum(zmax + b_ref[...], 0.0))
    # Exact handling of fully-masked groups: reference yields -inf there.
    out_ref[...] = jnp.where(zmax == -jnp.inf, -jnp.inf, act)


# --------------------------------------------------------------------------
# Sizing helpers
# --------------------------------------------------------------------------

def _vmem_limit_bytes():
    """Per-generation scoped-VMEM budget: ~96 MiB on 128 MiB-class chips
    (v5e/v6e), ~48 MiB on 64 MiB-class chips (v7x); conservative fallback."""
    cap = None
    try:
        cap = getattr(pltpu.get_tpu_info(), "vmem_capacity_bytes", None)
    except Exception:
        cap = None
    if cap is not None and cap >= 100 * 1024 * 1024:
        return 96 * 1024 * 1024
    return 48 * 1024 * 1024


def _choose_tb(batch, group, d, bytes_per_elem,
               target_block_bytes=2 * 1024 * 1024, min_steps=4):
    """Batch rows per grid step.  Sized so the x block is roughly
    target_block_bytes (HBM-roofline / per-step-overhead driven), a multiple
    of 8, while keeping >= min_steps grid steps when the batch allows it so
    double-buffering overlaps DMA and megacore gets >= 2 steps per TC."""
    row_bytes = max(1, group * d * bytes_per_elem)
    tb = target_block_bytes // row_bytes
    tb = max(8, (tb // 8) * 8)
    max_tb = max(8, ((batch // min_steps) // 8) * 8)
    return max(8, min(tb, max_tb))


def _choose_tn(d, dout_pad, bytes_per_elem,
               weight_budget_bytes=8 * 1024 * 1024):
    """Lane tile over the (padded) output dim: a multiple of 128 dividing
    dout_pad, small enough that a double-buffered (D, TN) weight block stays
    within the budget (keeps large W inside v7x's 64 MiB VMEM)."""
    per_col = max(1, 2 * d * bytes_per_elem)
    max_tn = max(128, (weight_budget_bytes // per_col) // 128 * 128)
    if dout_pad <= max_tn:
        return dout_pad
    best, t = 128, 128
    while t <= max_tn:
        if dout_pad % t == 0:
            best = t
        t += 128
    return best


# --------------------------------------------------------------------------
# Wrapper
# --------------------------------------------------------------------------

def max_pool_aggregator(x, mask, w=None, b=None, use_mlp=False,
                        matmul_dtype=jnp.bfloat16):
    """MaxPoolAggregator forward.

    x:    [B, G, D] f32 group-member embeddings
    mask: [B, G]    f32, 0 present / -inf absent
    w:    [D, Dout] f32 (= torch Linear weight.T), required when use_mlp
    b:    [Dout]    f32, required when use_mlp
    matmul_dtype: MXU input dtype on the mlp path (default bf16: ~3-6x MXU
                  throughput and half the HBM bytes; pass None for f32).
    Returns [B, Dout] (or [B, D] when use_mlp=False), f32.
    """
    B, G, D = x.shape
    x = x.astype(jnp.float32)
    mask = mask.astype(jnp.float32)

    # Pad G to a multiple of 8: clean sublane split for the group-max reshape.
    G_pad = _round_up(G, 8)
    if G_pad != G:
        x = jnp.pad(x, ((0, 0), (0, G_pad - G), (0, 0)))
        mask = jnp.pad(mask, ((0, 0), (0, G_pad - G)),
                       constant_values=float("-inf"))

    vmem_limit = _vmem_limit_bytes()

    if not use_mlp:
        # Pure mem-bound masked max-pool: keep f32 (exact), never ship W / b.
        tb = _choose_tb(B, G_pad, D, 4)
        B_pad = _round_up(B, tb)
        if B_pad != B:
            x = jnp.pad(x, ((0, B_pad - B), (0, 0), (0, 0)))
            mask = jnp.pad(mask, ((0, B_pad - B), (0, 0)),
                           constant_values=float("-inf"))
        x2 = x.reshape(B_pad * G_pad, D)
        mask2 = mask.reshape(B_pad * G_pad, 1)
        grid = (B_pad // tb,)
        # TODO(synk): the mask item 9 suggestion (presence bitmask via SMEM
        # scalar prefetch + in-kernel iota compare) is not implemented; the
        # (rows, 1) f32 mask block is kept for simplicity.
        out = pl.pallas_call(
            functools.partial(_agg_plain_kernel, group=G_pad),
            out_shape=jax.ShapeDtypeStruct((B_pad, D), jnp.float32),
            grid_spec=pltpu.PrefetchScalarGridSpec(
                num_scalar_prefetch=0,
                grid=grid,
                in_specs=[
                    pl.BlockSpec((tb * G_pad, D), lambda i: (i, 0)),
                    pl.BlockSpec((tb * G_pad, 1), lambda i: (i, 0)),
                ],
                out_specs=pl.BlockSpec((tb, D), lambda i: (i, 0)),
            ),
            compiler_params=pltpu.CompilerParams(
                dimension_semantics=("parallel",),
                vmem_limit_bytes=vmem_limit),
        )(x2, mask2)
        return out[:B]

    # ------------------------------ mlp path ------------------------------
    assert w is not None and b is not None
    Dout = w.shape[1]
    mm_dtype = jnp.float32 if matmul_dtype is None else matmul_dtype
    bytes_per_elem = jnp.dtype(mm_dtype).itemsize

    # Pad Dout to a multiple of 128: lane-dense matmul N dim and output stores.
    Dout_pad = _round_up(Dout, 128)
    w_p = w.astype(jnp.float32)
    b_p = b.reshape(1, Dout).astype(jnp.float32)
    if Dout_pad != Dout:
        w_p = jnp.pad(w_p, ((0, 0), (0, Dout_pad - Dout)))
        b_p = jnp.pad(b_p, ((0, 0), (0, Dout_pad - Dout)))

    tb = _choose_tb(B, G_pad, D, bytes_per_elem)
    B_pad = _round_up(B, tb)
    if B_pad != B:
        x = jnp.pad(x, ((0, B_pad - B), (0, 0), (0, 0)))
        mask = jnp.pad(mask, ((0, B_pad - B), (0, 0)),
                       constant_values=float("-inf"))

    # Wrapper-side cast: x block and W arrive in HBM already in bf16 (or the
    # requested dtype), halving DMA bytes and VMEM footprint vs in-kernel cast.
    x2 = x.reshape(B_pad * G_pad, D).astype(mm_dtype)
    mask2 = mask.reshape(B_pad * G_pad, 1)
    w_p = w_p.astype(mm_dtype)

    tn = _choose_tn(D, Dout_pad, bytes_per_elem)
    n_steps = Dout_pad // tn
    grid = (B_pad // tb, n_steps)

    def build(single_buffer_w):
        # Grid-invariant W / b blocks (single N tile): single-buffer them so
        # the weight occupies one VMEM buffer, not two (v7x 64 MiB budget).
        w_kwargs = ({"pipeline_mode": pl.Buffered(1)}
                    if single_buffer_w else {})
        in_specs = [
            pl.BlockSpec((tb * G_pad, D), lambda i, j: (i, 0)),
            pl.BlockSpec((tb * G_pad, 1), lambda i, j: (i, 0)),
            pl.BlockSpec((D, tn), lambda i, j: (0, j), **w_kwargs),
            pl.BlockSpec((1, tn), lambda i, j: (0, j), **w_kwargs),
        ]
        return pl.pallas_call(
            functools.partial(_agg_mlp_kernel, group=G_pad),
            out_shape=jax.ShapeDtypeStruct((B_pad, Dout_pad), jnp.float32),
            grid_spec=pltpu.PrefetchScalarGridSpec(
                num_scalar_prefetch=0,
                grid=grid,
                in_specs=in_specs,
                out_specs=pl.BlockSpec((tb, tn), lambda i, j: (i, j)),
            ),
            compiler_params=pltpu.CompilerParams(
                dimension_semantics=("parallel", "parallel"),
                vmem_limit_bytes=vmem_limit),
        )

    args = (x2, mask2, w_p, b_p)
    if n_steps == 1:
        try:
            out = build(True)(*args)
        except Exception:
            # pl.Buffered(1) / pipeline_mode not supported in this jax
            # version: fall back to default double-buffered weight blocks.
            out = build(False)(*args)
    else:
        out = build(False)(*args)
    return out[:B, :Dout]


# --------------------------------------------------------------------------
# Reference + test
# --------------------------------------------------------------------------

def _reference(x, mask, w, b, use_mlp):
    if use_mlp:
        h = jnp.tanh(jnp.maximum(x @ w + b[None, None, :], 0.0))
    else:
        h = x
    return jnp.max(h + mask[:, :, None], axis=1)


if __name__ == "__main__":
    # Deliberately awkward shapes to exercise the B / G / Dout padding paths.
    B, G, D, Dout = 10, 5, 32, 48

    key = jax.random.PRNGKey(0)
    kx, kw, km = jax.random.split(key, 3)

    x = jax.random.normal(kx, (B, G, D), dtype=jnp.float32)

    # nn.Linear(D, Dout) with xavier_uniform_ weight and zero bias
    # (weight stored transposed as [D, Dout] = torch weight.T).
    bound = (6.0 / (D + Dout)) ** 0.5
    w = jax.random.uniform(kw, (D, Dout), minval=-bound, maxval=bound,
                           dtype=jnp.float32)
    b = jnp.zeros((Dout,), dtype=jnp.float32)

    # mask: 0 for present, -inf for absent; keep >= 1 present member per group.
    present = jax.random.bernoulli(km, 0.7, (B, G))
    present = present.at[:, 0].set(True)
    mask = jnp.where(present, 0.0, -jnp.inf).astype(jnp.float32)

    # mlp=False path (pure masked max-pool; no W/b passed to the kernel).
    out_plain = jax.block_until_ready(
        max_pool_aggregator(x, mask, use_mlp=False))
    ref_plain = _reference(x, mask, w, b, use_mlp=False)

    # mlp=True path, f32 MXU inputs (opt-in exact path).
    out_mlp_f32 = jax.block_until_ready(
        max_pool_aggregator(x, mask, w, b, use_mlp=True, matmul_dtype=None))
    ref_mlp = _reference(x, mask, w, b, use_mlp=True)

    # mlp=True path, default bf16 MXU inputs / f32 accumulation.
    out_mlp_bf16 = jax.block_until_ready(
        max_pool_aggregator(x, mask, w, b, use_mlp=True))

    assert out_plain.shape == (B, D)
    assert out_mlp_f32.shape == (B, Dout)
    assert out_mlp_bf16.shape == (B, Dout)
    assert jnp.allclose(out_plain, ref_plain, atol=1e-5, rtol=1e-5)
    assert jnp.allclose(out_mlp_f32, ref_mlp, atol=1e-5, rtol=1e-5)
    assert jnp.allclose(out_mlp_bf16, ref_mlp, atol=5e-2, rtol=5e-2)

    # TODO(synk): mask=None branch of the torch module returns (values, indices)
    # from torch.max; the argmax-indices output is not implemented here.
    print("KERNEL_OK")
</pallas_src>

<mosaic_0001>
module attributes {stable_mosaic.version = 11 : i64} {
  func.func @_agg_plain_kernel(%arg0: i32, %arg1: memref<64x32xf32, #tpu.memory_space<vmem>>, %arg2: memref<64x1xf32, #tpu.memory_space<vmem>>, %arg3: memref<8x32xf32, #tpu.memory_space<vmem>>) attributes {dimension_semantics = [#tpu.dimension_semantics<parallel>], iteration_bounds = array<i64: 2>, scalar_prefetch = 0 : i64, scratch_operands = 0 : i64, tpu.core_type = #tpu.core_type<tc>, window_params = [{transform_indices = @transform_0, window_bounds = array<i64: 64, 32>}, {transform_indices = @transform_1, window_bounds = array<i64: 64, 1>}, {transform_indices = @transform_2, window_bounds = array<i64: 8, 32>}]} {
    %c0 = arith.constant 0 : index
    %c0_0 = arith.constant 0 : index
    %0 = vector.load %arg1[%c0, %c0_0] : memref<64x32xf32, #tpu.memory_space<vmem>>, vector<64x32xf32>
    %c0_1 = arith.constant 0 : index
    %c0_2 = arith.constant 0 : index
    %1 = vector.load %arg2[%c0_1, %c0_2] : memref<64x1xf32, #tpu.memory_space<vmem>>, vector<64x1xf32>
    %2 = vector.broadcast %1 : vector<64x1xf32> to vector<64x32xf32>
    %3 = arith.addf %0, %2 : vector<64x32xf32>
    %4 = vector.shape_cast %3 : vector<64x32xf32> to vector<8x8x32xf32>
    %cst = arith.constant dense<0xFF800000> : vector<8x32xf32>
    %5 = vector.multi_reduction <maximumf>, %4, %cst [1] : vector<8x8x32xf32> to vector<8x32xf32>
    %c0_3 = arith.constant 0 : index
    %c0_4 = arith.constant 0 : index
    %6 = vector.load %arg3[%c0_3, %c0_4] : memref<8x32xf32, #tpu.memory_space<vmem>>, vector<8x32xf32>
    tpu.vector_store %arg3[%c0_3, %c0_4], %5 {strides = array<i32>} : memref<8x32xf32, #tpu.memory_space<vmem>>, vector<8x32xf32>,
    return
  }
  func.func @transform_0(%arg0: i32) -> (i32, i32) {
    %c0_i32 = arith.constant 0 : i32
    %c0_i32_0 = arith.constant 0 : i32
    return %arg0, %c0_i32 : i32, i32
  }
  func.func @transform_1(%arg0: i32) -> (i32, i32) {
    %c0_i32 = arith.constant 0 : i32
    %c0_i32_0 = arith.constant 0 : i32
    return %arg0, %c0_i32 : i32, i32
  }
  func.func @transform_2(%arg0: i32) -> (i32, i32) {
    %c0_i32 = arith.constant 0 : i32
    %c0_i32_0 = arith.constant 0 : i32
    return %arg0, %c0_i32 : i32, i32
  }
}

</mosaic_0001>

<llo_original>
// kernel: tpu_custom_call.1
$region0: #{tpu_custom_call.1}
  #allocation0 [shape = 'u32[]', space=smem, size = 0x4, offset = 0x4, fixed_abs, tag = 'smem constant byte address 0x4 - core index']
  #allocation1 [shape = 'u32[144,128]{1,0:T(1,128)}', space=vmem, size = 0x12000, scoped, tag = 'internal scratch']
  %s0 = inlined_call_operand.vmem [shape: f32[128,32], index: 0, kind: input, shape index: {}]
  %s1 = inlined_call_operand.vmem [shape: f32[128,1], index: 1, kind: input, shape index: {}]
  %s2 = inlined_call_operand.hbm [shape: f32[16,32], index: 2, kind: output, shape index: {}]
  %s3 = sld [smem:[#allocation0]]
  $region41: #{tpu_custom_call.1} parent=0
    _
  %s5 = ssub.s32 1, %s3
  %s6 = scalar_select 0, %s5, %s3
  $region1: #{tpu_custom_call.1} parent=0
    #allocation2 [shape = 'u8[8192]{0}', space=vmem, size = 0x2000, scoped, tag = 'output window, operand 0']
    #allocation3 [shape = 's32[2]{0}', space=sflag, size = 0x8, scoped, tag = 'scoped memory for tpu_custom_call.1']
    %7 = vsyncpa [#allocation3], 0
    %s8 = scalar_lea.sflag [#allocation3], 1
    %9 = vsyncpa %s8, 0
    loop: start=0, step=1, limit=4
    $region2: #{tpu_custom_call.1} parent=1 // loop_pre_header
      _
    $region3: #{tpu_custom_call.1} parent=1 // loop_header
      %s11 = sphi 0, %s15
      %p12 = scmp.ge.s32.totalorder %s11, 4
      %s21 = sphi 0, %s23
      %s24 = sphi 0, %s21
      %s25 = sphi 0, %s24
      %s41 = sphi 0, %s25
      %s47 = sphi 0, %s49
      %s50 = sphi 0, %s47
      %s51 = sphi 0, %s50
      %s67 = sphi 0, %s51
      %s73 = sphi 0, %s75
      %s76 = sphi 0, %s73
      %s77 = sphi 0, %s76
      %s93 = sphi 0, %s77
    $region4: #{tpu_custom_call.1} parent=1 // loop_header_branch
      %14 = sbr.rel (%p12) target = $region8
    $region5: #{tpu_custom_call.1} parent=1 // loop_body
      %s16 = ssub.s32 %s11, 1
      %s17 = ssub.s32 %s11, 2
      %s18 = sadd.s32 %s11, 1
      %s19 = ssub.s32 %s11, %s18
      %p20 = scmp.eq.s32.totalorder %s19, 0
      %s22 = sadd.s32 %s21, 1
      %s23 = scalar_select %p20, %s21, %s22
      %p26 = pneg %p20
      %p27 = scmp.eq.s32.totalorder %s11, 1
      %p28 = por %p26, %p27
      %p29 = scmp.ne.s32.totalorder %s21, %s24
      %p30 = scmp.eq.s32.totalorder %s11, 0
      %p31 = por %p29, %p30
      %p32 = scmp.ne.s32.totalorder %s21, %s24
      %p33 = scmp.eq.s32.totalorder %s16, 1
      %p34 = por %p32, %p33
      %p35 = scmp.ne.s32.totalorder %s24, %s25
      %p36 = scmp.eq.s32.totalorder %s16, 0
      %p37 = por %p35, %p36
      %p38 = scmp.ne.s32.totalorder %s24, %s25
      %p39 = scmp.eq.s32.totalorder %s17, 1
      %p40 = por %p38, %p39
      %p42 = scmp.ne.s32.totalorder %s25, %s41
      %p43 = scmp.eq.s32.totalorder %s17, 0
      %p44 = por %p42, %p43
      %s45 = ssub.s32 %s11, %s18
      %p46 = scmp.eq.s32.totalorder %s45, 0
      %s48 = sadd.s32 %s47, 1
      %s49 = scalar_select %p46, %s47, %s48
      %p52 = pneg %p46
      %p53 = scmp.eq.s32.totalorder %s11, 1
      %p54 = por %p52, %p53
      %p55 = scmp.ne.s32.totalorder %s47, %s50
      %p56 = scmp.eq.s32.totalorder %s11, 0
      %p57 = por %p55, %p56
      %p58 = scmp.ne.s32.totalorder %s47, %s50
      %p59 = scmp.eq.s32.totalorder %s16, 1
      %p60 = por %p58, %p59
      %p61 = scmp.ne.s32.totalorder %s50, %s51
      %p62 = scmp.eq.s32.totalorder %s16, 0
      %p63 = por %p61, %p62
      %p64 = scmp.ne.s32.totalorder %s50, %s51
      %p65 = scmp.eq.s32.totalorder %s17, 1
      %p66 = por %p64, %p65
      %p68 = scmp.ne.s32.totalorder %s51, %s67
      %p69 = scmp.eq.s32.totalorder %s17, 0
      %p70 = por %p68, %p69
      %s71 = ssub.s32 %s11, %s18
      %p72 = scmp.eq.s32.totalorder %s71, 0
      %s74 = sadd.s32 %s73, 1
      %s75 = scalar_select %p72, %s73, %s74
      %p78 = pneg %p72
      %p79 = scmp.eq.s32.totalorder %s11, 1
      %p80 = por %p78, %p79
      %p81 = scmp.ne.s32.totalorder %s73, %s76
      %p82 = scmp.eq.s32.totalorder %s11, 0
      %p83 = por %p81, %p82
      %p84 = scmp.ne.s32.totalorder %s73, %s76
      %p85 = scmp.eq.s32.totalorder %s16, 1
      %p86 = por %p84, %p85
      %p87 = scmp.ne.s32.totalorder %s76, %s77
      %p88 = scmp.eq.s32.totalorder %s16, 0
      %p89 = por %p87, %p88
      %p90 = scmp.ne.s32.totalorder %s76, %s77
      %p91 = scmp.eq.s32.totalorder %s17, 1
      %p92 = por %p90, %p91
      %p94 = scmp.ne.s32.totalorder %s77, %s93
      %p95 = scmp.eq.s32.totalorder %s17, 0
      %p96 = por %p94, %p95
      %p97 = scmp.le.s32.totalorder 1, %s11
      %p98 = scmp.lt.s32.totalorder %s11, 3
      %p99 = pnand %p97, %p98
      %p100 = pneg %p99
      // Predicated region
      $region9: #{tpu_custom_call.1} parent=5 // pred_check
        _
      $region10: #{tpu_custom_call.1} parent=5 // pred_check_branch
        %102 = sbr.rel (%p99) target = $region12
      $region11: #{tpu_custom_call.1} parent=5 // pred_region
        %s103 = ssub.s32 %s11, 1
      $region12: #{tpu_custom_call.1} parent=5 // pred_fallthru
        _
      %p104 = scmp.lt.s32.totalorder %s11, 2
      // Predicated region
      $region13: #{tpu_custom_call.1} parent=5 // pred_check
        %p105 = pneg %p104
      $region14: #{tpu_custom_call.1} parent=5 // pred_check_branch
        %107 = sbr.rel (%p105) target = $region16
      $region15: #{tpu_custom_call.1} parent=5 // pred_region
        // Predicated region
        $region17: #{tpu_custom_call.1} parent=15 // pred_check
          %p108 = pneg %p31
        $region18: #{tpu_custom_call.1} parent=15 // pred_check_branch
          %110 = sbr.rel (%p108) target = $region20
        $region19: #{tpu_custom_call.1} parent=15 // pred_region
          %s111 = smul.u32 8, %s11
          %p112 = scmp.lt.s32.totalorder %s111, 15
          %s113 = scalar_select %p112, %s111, 15
          %s114 = smul.addr %s113, 8
          %s115 = scalar_lea.vmem %s0, %s114
          %s116 = smul.u32 8, %s11
        $region20: #{tpu_custom_call.1} parent=15 // pred_fallthru
          _
        // Predicated region
        $region21: #{tpu_custom_call.1} parent=15 // pred_check
          %p117 = pneg %p57
        $region22: #{tpu_custom_call.1} parent=15 // pred_check_branch
          %119 = sbr.rel (%p117) target = $region24
        $region23: #{tpu_custom_call.1} parent=15 // pred_region
          %s120 = smul.u32 8, %s11
          %p121 = scmp.lt.s32.totalorder %s120, 15
          %s122 = scalar_select %p121, %s120, 15
          %s123 = smul.addr %s122, 8
          %s124 = scalar_lea.vmem %s1, %s123
          %s125 = smul.u32 8, %s11
        $region24: #{tpu_custom_call.1} parent=15 // pred_fallthru
          _
      $region16: #{tpu_custom_call.1} parent=5 // pred_fallthru
        _
      %p126 = scmp.le.s32.totalorder 1, %s11
      %p127 = scmp.lt.s32.totalorder %s11, 3
      %p128 = pnand %p126, %p127
      %p129 = pneg %p128
      // Predicated region
      $region25: #{tpu_custom_call.1} parent=5 // pred_check
        _
      $region26: #{tpu_custom_call.1} parent=5 // pred_check_branch
        %131 = sbr.rel (%p128) target = $region28
      $region27: #{tpu_custom_call.1} parent=5 // pred_region
        %s132 = ssub.s32 %s11, 1
        %s133 = smul.u32 8, %s16
        %p134 = scmp.lt.s32.totalorder %s133, 15
        %s135 = scalar_select %p134, %s133, 15
        %s136 = smul.addr %s135, 8
        %s137 = scalar_lea.vmem %s0, %s136
        %p138 = pneg %p37
        %p139 = pneg %p34
        %s140 = smul.u32 8, %s16
        %p141 = scmp.lt.s32.totalorder %s140, 15
        %s142 = scalar_select %p141, %s140, 15
        %s143 = smul.addr %s142, 8
        %s144 = scalar_lea.vmem %s1, %s143
        %p145 = pneg %p63
        %p146 = pneg %p60
        %p147 = pneg %p89
        %p148 = pneg %p86
        %s149 = sand.u32 %s76, 1
        %s150 = scalar_lea.sflag [#allocation3], %s149
        %s151 = sand.u32 %s76, 1
        %s152 = smul.addr %s151, 8
        %s153 = scalar_lea.vmem [#allocation2], %s152
        %s154 = smul.u32 8, %s16
        %p155 = scmp.lt.s32.totalorder %s154, 15
        %s156 = scalar_select %p155, %s154, 15
        %s157 = smul.addr %s156, 8
        %s158 = scalar_lea.vmem %s0, %s157
        %s159 = smul.u32 8, %s16
        %s160 = smul.u32 8, %s16
        %p161 = scmp.lt.s32.totalorder %s160, 15
        %s162 = scalar_select %p161, %s160, 15
        %s163 = smul.addr %s162, 8
        %s164 = scalar_lea.vmem %s1, %s163
        %s165 = smul.u32 8, %s16
        %v166 = vld [vmem:[%s158] sm:$0xff]
        %v167 = vld [vmem:[%s158 + $0x8] sm:$0xff]
        %v168 = vld [vmem:[%s158 + $0x10] sm:$0xff]
        %v169 = vld [vmem:[%s158 + $0x18] sm:$0xff]
        %v170 = vld [vmem:[%s158 + $0x20] sm:$0xff]
        %v171 = vld [vmem:[%s158 + $0x28] sm:$0xff]
        %v172 = vld [vmem:[%s158 + $0x30] sm:$0xff]
        %v173 = vld [vmem:[%s158 + $0x38] sm:$0xff]
        %v174 = vld [vmem:[%s164] sm:$0xff]
        %v175 = vld [vmem:[%s164 + $0x8] sm:$0xff]
        %v176 = vld [vmem:[%s164 + $0x10] sm:$0xff]
        %v177 = vld [vmem:[%s164 + $0x18] sm:$0xff]
        %v178 = vld [vmem:[%s164 + $0x20] sm:$0xff]
        %v179 = vld [vmem:[%s164 + $0x28] sm:$0xff]
        %v180 = vld [vmem:[%s164 + $0x30] sm:$0xff]
        %v181 = vld [vmem:[%s164 + $0x38] sm:$0xff]
        %183 = vset.pattern.permute.xlu0 0
        %184 = vperm.xlu0 %183, %v174
        %v185 = vpop.permute.xlu0 %184
        %188 = vset.pattern.permute.xlu0 0
        %189 = vperm.xlu0 %188, %v175
        %v190 = vpop.permute.xlu0 %189
        %193 = vset.pattern.permute.xlu0 0
        %194 = vperm.xlu0 %193, %v176
        %v195 = vpop.permute.xlu0 %194
        %198 = vset.pattern.permute.xlu0 0
        %199 = vperm.xlu0 %198, %v177
        %v200 = vpop.permute.xlu0 %199
        %203 = vset.pattern.permute.xlu0 0
        %204 = vperm.xlu0 %203, %v178
        %v205 = vpop.permute.xlu0 %204
        %208 = vset.pattern.permute.xlu0 0
        %209 = vperm.xlu0 %208, %v179
        %v210 = vpop.permute.xlu0 %209
        %213 = vset.pattern.permute.xlu0 0
        %214 = vperm.xlu0 %213, %v180
        %v215 = vpop.permute.xlu0 %214
        %218 = vset.pattern.permute.xlu0 0
        %219 = vperm.xlu0 %218, %v181
        %v220 = vpop.permute.xlu0 %219
        %v222 = vadd.f32 %v166, %v185
        %v223 = vadd.f32 %v167, %v190
        %v224 = vadd.f32 %v168, %v195
        %v225 = vadd.f32 %v169, %v200
        %v226 = vadd.f32 %v170, %v205
        %v227 = vadd.f32 %v171, %v210
        %v228 = vadd.f32 %v172, %v215
        %v229 = vadd.f32 %v173, %v220
        %vm230 = vcmask 261120
        %v231 = vsel %vm230, %v222, -inf
        %v232 = vrot.slane %v231, 4
        %v233 = vmax.f32 %v231, %v232
        %v234 = vrot.slane %v233, 2
        %v235 = vmax.f32 %v233, %v234
        %v236 = vrot.slane %v235, 1
        %v237 = vmax.f32 %v235, %v236
        %v238 = vsel %vm230, %v223, -inf
        %v239 = vrot.slane %v238, 4
        %v240 = vmax.f32 %v238, %v239
        %v241 = vrot.slane %v240, 2
        %v242 = vmax.f32 %v240, %v241
        %v243 = vrot.slane %v242, 1
        %v244 = vmax.f32 %v242, %v243
        %v245 = vsel %vm230, %v224, -inf
        %v246 = vrot.slane %v245, 4
        %v247 = vmax.f32 %v245, %v246
        %v248 = vrot.slane %v247, 2
        %v249 = vmax.f32 %v247, %v248
        %v250 = vrot.slane %v249, 1
        %v251 = vmax.f32 %v249, %v250
        %v252 = vsel %vm230, %v225, -inf
        %v253 = vrot.slane %v252, 4
        %v254 = vmax.f32 %v252, %v253
        %v255 = vrot.slane %v254, 2
        %v256 = vmax.f32 %v254, %v255
        %v257 = vrot.slane %v256, 1
        %v258 = vmax.f32 %v256, %v257
        %v259 = vsel %vm230, %v226, -inf
        %v260 = vrot.slane %v259, 4
        %v261 = vmax.f32 %v259, %v260
        %v262 = vrot.slane %v261, 2
        %v263 = vmax.f32 %v261, %v262
        %v264 = vrot.slane %v263, 1
        %v265 = vmax.f32 %v263, %v264
        %v266 = vsel %vm230, %v227, -inf
        %v267 = vrot.slane %v266, 4
        %v268 = vmax.f32 %v266, %v267
        %v269 = vrot.slane %v268, 2
        %v270 = vmax.f32 %v268, %v269
        %v271 = vrot.slane %v270, 1
        %v272 = vmax.f32 %v270, %v271
        %v273 = vsel %vm230, %v228, -inf
        %v274 = vrot.slane %v273, 4
        %v275 = vmax.f32 %v273, %v274
        %v276 = vrot.slane %v275, 2
        %v277 = vmax.f32 %v275, %v276
        %v278 = vrot.slane %v277, 1
        %v279 = vmax.f32 %v277, %v278
        %v280 = vsel %vm230, %v229, -inf
        %v281 = vrot.slane %v280, 4
        %v282 = vmax.f32 %v280, %v281
        %v283 = vrot.slane %v282, 2
        %v284 = vmax.f32 %v282, %v283
        %v285 = vrot.slane %v284, 1
        %v286 = vmax.f32 %v284, %v285
        %vm295 = vcmask 1041409
        %v296 = vsel %vm295, %v244, %v237
        %vm297 = vcmask 1042434
        %v298 = vsel %vm297, %v251, %v296
        %vm299 = vcmask 1043459
        %v300 = vsel %vm299, %v258, %v298
        %vm301 = vcmask 1044484
        %v302 = vsel %vm301, %v265, %v300
        %vm303 = vcmask 1045509
        %v304 = vsel %vm303, %v272, %v302
        %vm305 = vcmask 1046534
        %v306 = vsel %vm305, %v279, %v304
        %vm307 = vcmask 1047559
        %v308 = vsel %vm307, %v286, %v306
        %310 = vst.msk [vmem:[%s153] sm:$0xff] %vm230, %v308
        %s311 = sand.u32 %s76, 1
        %s312 = scalar_lea.sflag [#allocation3], %s311
        %s313 = sand.u32 %s76, 1
        %s314 = smul.addr %s313, 8
        %s315 = scalar_lea.vmem [#allocation2], %s314
        // Predicated region
        $region29: #{tpu_custom_call.1} parent=27 // pred_check
          %p316 = pneg %p86
        $region30: #{tpu_custom_call.1} parent=27 // pred_check_branch
          %318 = sbr.rel (%p316) target = $region32
        $region31: #{tpu_custom_call.1} parent=27 // pred_region
          %s320 = ssub.s32 128, 128
          %321 = vsyncadd %s312, %s320
          %s322 = smul.addr %s16, 128
          %s323 = scalar_lea.hbm %s2, %s322
          %s325 = sshll.u32 %s315, 4
          %s326 = int_to_ptr.vmem [resolvable:$true] %s325
          %328 = dma.vmem_to_hbm [thread:$0]  %s326, 128, %s323, %s312
        $region32: #{tpu_custom_call.1} parent=27 // pred_fallthru
          _
      $region28: #{tpu_custom_call.1} parent=5 // pred_fallthru
        _
      %p329 = scmp.le.s32.totalorder 2, %s11
      // Predicated region
      $region33: #{tpu_custom_call.1} parent=5 // pred_check
        %p330 = pneg %p329
      $region34: #{tpu_custom_call.1} parent=5 // pred_check_branch
        %332 = sbr.rel (%p330) target = $region36
      $region35: #{tpu_custom_call.1} parent=5 // pred_region
        %s333 = ssub.s32 %s11, 2
        // Predicated region
        $region37: #{tpu_custom_call.1} parent=35 // pred_check
          %p334 = pneg %p92
        $region38: #{tpu_custom_call.1} parent=35 // pred_check_branch
          %336 = sbr.rel (%p334) target = $region40
        $region39: #{tpu_custom_call.1} parent=35 // pred_region
          %s337 = sand.u32 %s77, 1
          %s338 = scalar_lea.sflag [#allocation3], %s337
          %s339 = sand.u32 %s77, 1
          %s340 = smul.addr %s339, 8
          %s341 = scalar_lea.vmem [#allocation2], %s340
          %342 = dma.done %s338, 128
        $region40: #{tpu_custom_call.1} parent=35 // pred_fallthru
          _
      $region36: #{tpu_custom_call.1} parent=5 // pred_fallthru
        _
    $region6: #{tpu_custom_call.1} parent=1 // loop_footer
      %s15 = sadd.s32 1, %s11
    $region7: #{tpu_custom_call.1} parent=1 // loop_footer_branch
      %10 = sbr.rel target = $region3
    $region8: #{tpu_custom_call.1} parent=1 // loop_exit
      _
    %343 = vsyncpa [#allocation3], 1
    %s344 = scalar_lea.sflag [#allocation3], 1
    %345 = vsyncpa %s344, 1

</llo_original>
